<compile_context>
chip_gen: v6e
topology: v6e:2x2x1
jax: 0.10.0
libtpu: 0.0.40
codegen_flags: <defaults>
</compile_context>

<pallas_src>
import jax
import jax.numpy as jnp
from jax import lax
from jax.experimental import pallas as pl
from jax.experimental.pallas import tpu as pltpu

KSIZE = 7
PAD = 3  # padding = 3 for kernel_size = 7 (as in the PyTorch module)


def spatial_attention_kernel(x_ref, b_ref, o_ref, pad_ref):
    # x_ref:   (nb, C, H, W)          input image block
    # b_ref:   (K, 2*W, W) bf16       banded conv operator (one block per kernel row)
    # o_ref:   (nb, H, W)             sigmoid(conv) output block
    # pad_ref: (nb, H + 2*pad, 2*W)   f32 scratch: row-zero-padded [avg | max] map
    nb, c, h, w = x_ref.shape
    k = b_ref.shape[0]
    pad = k // 2

    x = x_ref[...].astype(jnp.float32)                   # (nb, C, H, W)

    # Channel mean/max on the VPU, unrolled over the (static) channel axis.
    # TODO(synk): for CBAM-realistic C (256..2048) add an 'arbitrary' C grid
    # axis with running sum/max accumulators so the x block stays bounded.
    x0 = x[:, 0]
    s = x0
    m = x0
    for i in range(1, c):
        xi = x[:, i]
        s = s + xi
        m = jnp.maximum(m, xi)
    avg = s * jnp.float32(1.0 / c)                        # (nb, H, W)

    # Build the row-padded, channel-stacked map in VMEM scratch:
    #   pad_ref[n, y + pad, 0:W]  = avg[n, y, :]
    #   pad_ref[n, y + pad, W:2W] = max[n, y, :]
    # with zero halo rows (the conv's zero "same" padding along H).
    zeros_halo = jnp.zeros((nb, pad, 2 * w), jnp.float32)
    pad_ref[:, :pad, :] = zeros_halo
    pad_ref[:, pad + h:, :] = zeros_halo
    pad_ref[:, pad:pad + h, :w] = avg
    pad_ref[:, pad:pad + h, w:] = m

    # 7x7 conv as K banded MXU matmuls: for kernel row ky, the H-row band
    # pad_ref[:, ky:ky+H, :] (both channels stacked -> contraction dim 2*W)
    # multiplies a (2*W, W) Toeplitz block holding the w[:, :, ky, :] taps
    # (x-direction zero padding is baked into the operator).
    acc = jnp.zeros((nb * h, w), jnp.float32)
    for ky in range(k):                                   # static unroll, K = 7
        lhs = pad_ref[:, ky:ky + h, :].astype(jnp.bfloat16).reshape(nb * h, 2 * w)
        acc = acc + jnp.dot(lhs, b_ref[ky],               # bf16 x bf16 -> f32
                            preferred_element_type=jnp.float32)

    o_ref[...] = jax.nn.sigmoid(acc).reshape(nb, h, w).astype(o_ref.dtype)


def _banded_conv_operator(w, W):
    """Banded operator B (K, 2*W, W) bf16 for the 7x7 'same' conv.

    out[n, y, v] = sum_ky  lhs_ky[n, y, :] @ B[ky]
    where lhs_ky[n, y, c*W + u] = in_c[n, y + ky - pad, u] (zero outside), and
    B[ky, c*W + u, v] = w[0, c, ky, u - v + pad] when that tap index is inside
    the kernel window, else 0 (zero padding along x baked in).
    Cost is O(K * W^2) — tiny and constant across grid steps.  If the conv
    weights are static (inference), build this once at module init.
    """
    k = w.shape[-1]
    pad = k // 2
    u = jnp.arange(W)[:, None]
    v = jnp.arange(W)[None, :]
    kx = u - v + pad                                      # (W, W)
    valid = (kx >= 0) & (kx < k)
    kxc = jnp.clip(kx, 0, k - 1)
    taps = w[0].astype(jnp.float32)                       # (2, K, K)
    band = jnp.where(valid[None, None], taps[:, :, kxc], 0.0)   # (2, K, W, W)
    band = jnp.transpose(band, (1, 0, 2, 3)).reshape(k, 2 * W, W)
    return band.astype(jnp.bfloat16)


def spatial_attention(x, w, *, block_batch=None):
    # x: (N, C, H, W) float32/bf16; w: (1, 2, K, K) float32 (OIHW, like PyTorch)
    N, C, H, W = x.shape
    K = w.shape[-1]
    kpad = K // 2

    b = _banded_conv_operator(w, W)                       # (K, 2*W, W) bf16

    # Lane/sublane padded sizes (for VMEM accounting only).
    wpad = -(-W // 128) * 128
    hpad = -(-H // 8) * 8
    in_blk_per_img = C * hpad * wpad * x.dtype.itemsize

    if block_batch is None:
        # nb*H is the MXU M dimension: target ~256 rows, but keep >= 2 grid
        # steps so v7x's two TensorCores both get work, and bound block VMEM.
        nb = max(1, 256 // H)
        if N >= 2:
            nb = min(nb, max(1, N // 2))
        nb = min(nb, N)
        nb = min(nb, max(1, (8 << 20) // (2 * in_blk_per_img)))
    else:
        nb = max(1, min(block_batch, N))
    grid = pl.cdiv(N, nb)                                 # ragged last block is fine

    # Generous VMEM budget (lane-padded blocks, double buffering, headroom);
    # comfortably inside v5e/v6e (128 MiB) and v7x (64 MiB physical).
    blk_bytes = nb * (in_blk_per_img                       # input block
                      + hpad * wpad * 4                    # output block
                      + (hpad + 2 * kpad) * 2 * wpad * 4)  # padded scratch
    op_bytes = K * 2 * W * wpad * 2
    vmem_limit = int(min(max(4 * blk_bytes + 4 * op_bytes + (4 << 20), 8 << 20),
                         48 << 20))

    out = pl.pallas_call(
        spatial_attention_kernel,
        out_shape=jax.ShapeDtypeStruct((N, H, W), jnp.float32),
        grid_spec=pltpu.PrefetchScalarGridSpec(
            num_scalar_prefetch=0,
            grid=(grid,),
            in_specs=[
                pl.BlockSpec((nb, C, H, W), lambda n: (n, 0, 0, 0)),
                # Constant banded operator; ~K*2W*W bf16 (a few KiB), so its
                # buffering is immaterial now that the dense operator is gone.
                pl.BlockSpec((K, 2 * W, W), lambda n: (0, 0, 0)),
            ],
            out_specs=pl.BlockSpec((nb, H, W), lambda n: (n, 0, 0)),
            scratch_shapes=[pltpu.VMEM((nb, H + 2 * kpad, 2 * W), jnp.float32)],
        ),
        compiler_params=pltpu.CompilerParams(
            dimension_semantics=("parallel",),            # batch images independent
            vmem_limit_bytes=vmem_limit),
    )(x, b)

    return out.reshape(N, 1, H, W)


def spatial_attention_reference(x, w):
    avg = jnp.mean(x, axis=1, keepdims=True)
    mx = jnp.max(x, axis=1, keepdims=True)
    cat = jnp.concatenate([avg, mx], axis=1)
    y = lax.conv_general_dilated(
        cat, w, window_strides=(1, 1),
        padding=((PAD, PAD), (PAD, PAD)),
        dimension_numbers=("NCHW", "OIHW", "NCHW"),
        precision=lax.Precision.HIGHEST,
    )
    return jax.nn.sigmoid(y)


if __name__ == "__main__":
    key = jax.random.PRNGKey(0)
    k_x, k_w = jax.random.split(key)

    N, C, H, W = 2, 4, 16, 16
    x = jax.random.normal(k_x, (N, C, H, W), dtype=jnp.float32)
    # Deterministic synthetic conv1 weights: Conv2d(2, 1, 7, bias=False) -> (1, 2, 7, 7)
    w = jax.random.normal(k_w, (1, 2, KSIZE, KSIZE), dtype=jnp.float32) * 0.1

    out = jax.block_until_ready(spatial_attention(x, w))

    ref = spatial_attention_reference(x, w)
    assert out.shape == (N, 1, H, W)
    # bf16 MXU operands (single-pass) vs f32 HIGHEST reference: expect ~1e-3
    # absolute error after the sigmoid.
    max_err = float(jnp.max(jnp.abs(out - ref)))
    assert jnp.allclose(out, ref, atol=1e-2, rtol=1e-2), (
        f"mismatch vs reference (max abs err {max_err:.3e})")

    print("KERNEL_OK")
</pallas_src>

<mosaic_0001>
module attributes {stable_mosaic.version = 11 : i64} {
  func.func @spatial_attention_kernel(%arg0: i32, %arg1: memref<1x4x16x16xf32, #tpu.memory_space<vmem>>, %arg2: memref<7x32x16xbf16, #tpu.memory_space<vmem>>, %arg3: memref<1x16x16xf32, #tpu.memory_space<vmem>>, %arg4: memref<1x22x32xf32, #tpu.memory_space<vmem>>) attributes {dimension_semantics = [#tpu.dimension_semantics<parallel>], iteration_bounds = array<i64: 2>, scalar_prefetch = 0 : i64, scratch_operands = 1 : i64, tpu.core_type = #tpu.core_type<tc>, window_params = [{transform_indices = @transform_0, window_bounds = array<i64: 1, 4, 16, 16>}, {pipeline_mode = #tpu.pipeline_mode<synchronous>, transform_indices = @transform_1, window_bounds = array<i64: 7, 32, 16>}, {transform_indices = @transform_2, window_bounds = array<i64: 1, 16, 16>}]} {
    %c0 = arith.constant 0 : index
    %c0_0 = arith.constant 0 : index
    %c0_1 = arith.constant 0 : index
    %c0_2 = arith.constant 0 : index
    %0 = vector.load %arg1[%c0, %c0_0, %c0_1, %c0_2] : memref<1x4x16x16xf32, #tpu.memory_space<vmem>>, vector<1x4x16x16xf32>
    %1 = vector.extract_strided_slice %0 {offsets = [0, 0, 0, 0], sizes = [1, 1, 16, 16], strides = [1, 1, 1, 1]} : vector<1x4x16x16xf32> to vector<1x1x16x16xf32>
    %2 = vector.shape_cast %1 : vector<1x1x16x16xf32> to vector<1x16x16xf32>
    %3 = vector.extract_strided_slice %0 {offsets = [0, 1, 0, 0], sizes = [1, 1, 16, 16], strides = [1, 1, 1, 1]} : vector<1x4x16x16xf32> to vector<1x1x16x16xf32>
    %4 = vector.shape_cast %3 : vector<1x1x16x16xf32> to vector<1x16x16xf32>
    %5 = arith.addf %2, %4 : vector<1x16x16xf32>
    %6 = arith.maximumf %2, %4 : vector<1x16x16xf32>
    %7 = vector.extract_strided_slice %0 {offsets = [0, 2, 0, 0], sizes = [1, 1, 16, 16], strides = [1, 1, 1, 1]} : vector<1x4x16x16xf32> to vector<1x1x16x16xf32>
    %8 = vector.shape_cast %7 : vector<1x1x16x16xf32> to vector<1x16x16xf32>
    %9 = arith.addf %5, %8 : vector<1x16x16xf32>
    %10 = arith.maximumf %6, %8 : vector<1x16x16xf32>
    %11 = vector.extract_strided_slice %0 {offsets = [0, 3, 0, 0], sizes = [1, 1, 16, 16], strides = [1, 1, 1, 1]} : vector<1x4x16x16xf32> to vector<1x1x16x16xf32>
    %12 = vector.shape_cast %11 : vector<1x1x16x16xf32> to vector<1x16x16xf32>
    %13 = arith.addf %9, %12 : vector<1x16x16xf32>
    %14 = arith.maximumf %10, %12 : vector<1x16x16xf32>
    %cst = arith.constant 2.500000e-01 : f32
    %15 = vector.broadcast %cst : f32 to vector<1x16x16xf32>
    %16 = arith.mulf %13, %15 : vector<1x16x16xf32>
    %cst_3 = arith.constant 0.000000e+00 : f32
    %17 = vector.broadcast %cst_3 : f32 to vector<1x3x32xf32>
    %c0_4 = arith.constant 0 : index
    %c0_5 = arith.constant 0 : index
    %c0_6 = arith.constant 0 : index
    %18 = vector.load %arg4[%c0_4, %c0_5, %c0_6] : memref<1x22x32xf32, #tpu.memory_space<vmem>>, vector<1x3x32xf32>
    tpu.vector_store %arg4[%c0_4, %c0_5, %c0_6], %17 {strides = array<i32>} : memref<1x22x32xf32, #tpu.memory_space<vmem>>, vector<1x3x32xf32>,
    %c0_7 = arith.constant 0 : index
    %c19 = arith.constant 19 : index
    %c0_8 = arith.constant 0 : index
    %19 = vector.load %arg4[%c0_7, %c19, %c0_8] : memref<1x22x32xf32, #tpu.memory_space<vmem>>, vector<1x3x32xf32>
    tpu.vector_store %arg4[%c0_7, %c19, %c0_8], %17 {strides = array<i32>} : memref<1x22x32xf32, #tpu.memory_space<vmem>>, vector<1x3x32xf32>,
    %c0_9 = arith.constant 0 : index
    %c3 = arith.constant 3 : index
    %c0_10 = arith.constant 0 : index
    %20 = vector.load %arg4[%c0_9, %c3, %c0_10] : memref<1x22x32xf32, #tpu.memory_space<vmem>>, vector<1x16x16xf32>
    tpu.vector_store %arg4[%c0_9, %c3, %c0_10], %16 {strides = array<i32>} : memref<1x22x32xf32, #tpu.memory_space<vmem>>, vector<1x16x16xf32>,
    %c0_11 = arith.constant 0 : index
    %c3_12 = arith.constant 3 : index
    %c16 = arith.constant 16 : index
    %21 = vector.load %arg4[%c0_11, %c3_12, %c16] : memref<1x22x32xf32, #tpu.memory_space<vmem>>, vector<1x16x16xf32>
    tpu.vector_store %arg4[%c0_11, %c3_12, %c16], %14 {strides = array<i32>} : memref<1x22x32xf32, #tpu.memory_space<vmem>>, vector<1x16x16xf32>,
    %cst_13 = arith.constant 0.000000e+00 : f32
    %22 = vector.broadcast %cst_13 : f32 to vector<16x16xf32>
    %c0_14 = arith.constant 0 : index
    %c0_15 = arith.constant 0 : index
    %c0_16 = arith.constant 0 : index
    %23 = vector.load %arg4[%c0_14, %c0_15, %c0_16] : memref<1x22x32xf32, #tpu.memory_space<vmem>>, vector<1x16x32xf32>
    %24 = arith.truncf %23 : vector<1x16x32xf32> to vector<1x16x32xbf16>
    %25 = vector.shape_cast %24 : vector<1x16x32xbf16> to vector<16x32xbf16>
    %c0_17 = arith.constant 0 : index
    %c0_18 = arith.constant 0 : index
    %c0_19 = arith.constant 0 : index
    %26 = vector.load %arg2[%c0_17, %c0_18, %c0_19] : memref<7x32x16xbf16, #tpu.memory_space<vmem>>, vector<1x32x16xbf16>
    %27 = vector.shape_cast %26 : vector<1x32x16xbf16> to vector<32x16xbf16>
    %cst_20 = arith.constant dense<0.000000e+00> : vector<16x16xf32>
    %28 = tpu.matmul %25, %27, %cst_20 {dimension_numbers = #tpu.dot_dimension_numbers<[1], [0], [0], [1], [0, 0, 1, 1], [], []>} : vector<16x32xbf16>, vector<32x16xbf16>, vector<16x16xf32> -> vector<16x16xf32>
    %29 = arith.addf %22, %28 : vector<16x16xf32>
    %c0_21 = arith.constant 0 : index
    %c1 = arith.constant 1 : index
    %c0_22 = arith.constant 0 : index
    %30 = vector.load %arg4[%c0_21, %c1, %c0_22] : memref<1x22x32xf32, #tpu.memory_space<vmem>>, vector<1x16x32xf32>
    %31 = arith.truncf %30 : vector<1x16x32xf32> to vector<1x16x32xbf16>
    %32 = vector.shape_cast %31 : vector<1x16x32xbf16> to vector<16x32xbf16>
    %c1_23 = arith.constant 1 : index
    %c0_24 = arith.constant 0 : index
    %c0_25 = arith.constant 0 : index
    %33 = vector.load %arg2[%c1_23, %c0_24, %c0_25] : memref<7x32x16xbf16, #tpu.memory_space<vmem>>, vector<1x32x16xbf16>
    %34 = vector.shape_cast %33 : vector<1x32x16xbf16> to vector<32x16xbf16>
    %cst_26 = arith.constant dense<0.000000e+00> : vector<16x16xf32>
    %35 = tpu.matmul %32, %34, %cst_26 {dimension_numbers = #tpu.dot_dimension_numbers<[1], [0], [0], [1], [0, 0, 1, 1], [], []>} : vector<16x32xbf16>, vector<32x16xbf16>, vector<16x16xf32> -> vector<16x16xf32>
    %36 = arith.addf %29, %35 : vector<16x16xf32>
    %c0_27 = arith.constant 0 : index
    %c2 = arith.constant 2 : index
    %c0_28 = arith.constant 0 : index
    %37 = vector.load %arg4[%c0_27, %c2, %c0_28] : memref<1x22x32xf32, #tpu.memory_space<vmem>>, vector<1x16x32xf32>
    %38 = arith.truncf %37 : vector<1x16x32xf32> to vector<1x16x32xbf16>
    %39 = vector.shape_cast %38 : vector<1x16x32xbf16> to vector<16x32xbf16>
    %c2_29 = arith.constant 2 : index
    %c0_30 = arith.constant 0 : index
    %c0_31 = arith.constant 0 : index
    %40 = vector.load %arg2[%c2_29, %c0_30, %c0_31] : memref<7x32x16xbf16, #tpu.memory_space<vmem>>, vector<1x32x16xbf16>
    %41 = vector.shape_cast %40 : vector<1x32x16xbf16> to vector<32x16xbf16>
    %cst_32 = arith.constant dense<0.000000e+00> : vector<16x16xf32>
    %42 = tpu.matmul %39, %41, %cst_32 {dimension_numbers = #tpu.dot_dimension_numbers<[1], [0], [0], [1], [0, 0, 1, 1], [], []>} : vector<16x32xbf16>, vector<32x16xbf16>, vector<16x16xf32> -> vector<16x16xf32>
    %43 = arith.addf %36, %42 : vector<16x16xf32>
    %c0_33 = arith.constant 0 : index
    %c3_34 = arith.constant 3 : index
    %c0_35 = arith.constant 0 : index
    %44 = vector.load %arg4[%c0_33, %c3_34, %c0_35] : memref<1x22x32xf32, #tpu.memory_space<vmem>>, vector<1x16x32xf32>
    %45 = arith.truncf %44 : vector<1x16x32xf32> to vector<1x16x32xbf16>
    %46 = vector.shape_cast %45 : vector<1x16x32xbf16> to vector<16x32xbf16>
    %c3_36 = arith.constant 3 : index
    %c0_37 = arith.constant 0 : index
    %c0_38 = arith.constant 0 : index
    %47 = vector.load %arg2[%c3_36, %c0_37, %c0_38] : memref<7x32x16xbf16, #tpu.memory_space<vmem>>, vector<1x32x16xbf16>
    %48 = vector.shape_cast %47 : vector<1x32x16xbf16> to vector<32x16xbf16>
    %cst_39 = arith.constant dense<0.000000e+00> : vector<16x16xf32>
    %49 = tpu.matmul %46, %48, %cst_39 {dimension_numbers = #tpu.dot_dimension_numbers<[1], [0], [0], [1], [0, 0, 1, 1], [], []>} : vector<16x32xbf16>, vector<32x16xbf16>, vector<16x16xf32> -> vector<16x16xf32>
    %50 = arith.addf %43, %49 : vector<16x16xf32>
    %c0_40 = arith.constant 0 : index
    %c4 = arith.constant 4 : index
    %c0_41 = arith.constant 0 : index
    %51 = vector.load %arg4[%c0_40, %c4, %c0_41] : memref<1x22x32xf32, #tpu.memory_space<vmem>>, vector<1x16x32xf32>
    %52 = arith.truncf %51 : vector<1x16x32xf32> to vector<1x16x32xbf16>
    %53 = vector.shape_cast %52 : vector<1x16x32xbf16> to vector<16x32xbf16>
    %c4_42 = arith.constant 4 : index
    %c0_43 = arith.constant 0 : index
    %c0_44 = arith.constant 0 : index
    %54 = vector.load %arg2[%c4_42, %c0_43, %c0_44] : memref<7x32x16xbf16, #tpu.memory_space<vmem>>, vector<1x32x16xbf16>
    %55 = vector.shape_cast %54 : vector<1x32x16xbf16> to vector<32x16xbf16>
    %cst_45 = arith.constant dense<0.000000e+00> : vector<16x16xf32>
    %56 = tpu.matmul %53, %55, %cst_45 {dimension_numbers = #tpu.dot_dimension_numbers<[1], [0], [0], [1], [0, 0, 1, 1], [], []>} : vector<16x32xbf16>, vector<32x16xbf16>, vector<16x16xf32> -> vector<16x16xf32>
    %57 = arith.addf %50, %56 : vector<16x16xf32>
    %c0_46 = arith.constant 0 : index
    %c5 = arith.constant 5 : index
    %c0_47 = arith.constant 0 : index
    %58 = vector.load %arg4[%c0_46, %c5, %c0_47] : memref<1x22x32xf32, #tpu.memory_space<vmem>>, vector<1x16x32xf32>
    %59 = arith.truncf %58 : vector<1x16x32xf32> to vector<1x16x32xbf16>
    %60 = vector.shape_cast %59 : vector<1x16x32xbf16> to vector<16x32xbf16>
    %c5_48 = arith.constant 5 : index
    %c0_49 = arith.constant 0 : index
    %c0_50 = arith.constant 0 : index
    %61 = vector.load %arg2[%c5_48, %c0_49, %c0_50] : memref<7x32x16xbf16, #tpu.memory_space<vmem>>, vector<1x32x16xbf16>
    %62 = vector.shape_cast %61 : vector<1x32x16xbf16> to vector<32x16xbf16>
    %cst_51 = arith.constant dense<0.000000e+00> : vector<16x16xf32>
    %63 = tpu.matmul %60, %62, %cst_51 {dimension_numbers = #tpu.dot_dimension_numbers<[1], [0], [0], [1], [0, 0, 1, 1], [], []>} : vector<16x32xbf16>, vector<32x16xbf16>, vector<16x16xf32> -> vector<16x16xf32>
    %64 = arith.addf %57, %63 : vector<16x16xf32>
    %c0_52 = arith.constant 0 : index
    %c6 = arith.constant 6 : index
    %c0_53 = arith.constant 0 : index
    %65 = vector.load %arg4[%c0_52, %c6, %c0_53] : memref<1x22x32xf32, #tpu.memory_space<vmem>>, vector<1x16x32xf32>
    %66 = arith.truncf %65 : vector<1x16x32xf32> to vector<1x16x32xbf16>
    %67 = vector.shape_cast %66 : vector<1x16x32xbf16> to vector<16x32xbf16>
    %c6_54 = arith.constant 6 : index
    %c0_55 = arith.constant 0 : index
    %c0_56 = arith.constant 0 : index
    %68 = vector.load %arg2[%c6_54, %c0_55, %c0_56] : memref<7x32x16xbf16, #tpu.memory_space<vmem>>, vector<1x32x16xbf16>
    %69 = vector.shape_cast %68 : vector<1x32x16xbf16> to vector<32x16xbf16>
    %cst_57 = arith.constant dense<0.000000e+00> : vector<16x16xf32>
    %70 = tpu.matmul %67, %69, %cst_57 {dimension_numbers = #tpu.dot_dimension_numbers<[1], [0], [0], [1], [0, 0, 1, 1], [], []>} : vector<16x32xbf16>, vector<32x16xbf16>, vector<16x16xf32> -> vector<16x16xf32>
    %71 = arith.addf %64, %70 : vector<16x16xf32>
    %72 = arith.negf %71 : vector<16x16xf32>
    %73 = math.exp %72 : vector<16x16xf32>
    %cst_58 = arith.constant 1.000000e+00 : f32
    %74 = vector.broadcast %cst_58 : f32 to vector<16x16xf32>
    %75 = arith.addf %74, %73 : vector<16x16xf32>
    %76 = arith.divf %74, %75 : vector<16x16xf32>
    %77 = vector.shape_cast %76 : vector<16x16xf32> to vector<1x16x16xf32>
    %c0_59 = arith.constant 0 : index
    %c0_60 = arith.constant 0 : index
    %c0_61 = arith.constant 0 : index
    %78 = vector.load %arg3[%c0_59, %c0_60, %c0_61] : memref<1x16x16xf32, #tpu.memory_space<vmem>>, vector<1x16x16xf32>
    tpu.vector_store %arg3[%c0_59, %c0_60, %c0_61], %77 {strides = array<i32>} : memref<1x16x16xf32, #tpu.memory_space<vmem>>, vector<1x16x16xf32>,
    return
  }
  func.func @transform_0(%arg0: i32) -> (i32, i32, i32, i32) {
    %c0_i32 = arith.constant 0 : i32
    %c0_i32_0 = arith.constant 0 : i32
    %c0_i32_1 = arith.constant 0 : i32
    %c0_i32_2 = arith.constant 0 : i32
    return %arg0, %c0_i32, %c0_i32_0, %c0_i32_1 : i32, i32, i32, i32
  }
  func.func @transform_1(%arg0: i32) -> (i32, i32, i32) {
    %c0_i32 = arith.constant 0 : i32
    %c0_i32_0 = arith.constant 0 : i32
    %c0_i32_1 = arith.constant 0 : i32
    %c0_i32_2 = arith.constant 0 : i32
    return %c0_i32, %c0_i32_0, %c0_i32_1 : i32, i32, i32
  }
  func.func @transform_2(%arg0: i32) -> (i32, i32, i32) {
    %c0_i32 = arith.constant 0 : i32
    %c0_i32_0 = arith.constant 0 : i32
    %c0_i32_1 = arith.constant 0 : i32
    return %arg0, %c0_i32, %c0_i32_0 : i32, i32, i32
  }
}

</mosaic_0001>

<llo_original>
// kernel: tpu_custom_call.1
$region0: #{tpu_custom_call.1}
  #allocation0 [shape = 'u32[]', space=smem, size = 0x4, offset = 0x4, fixed_abs, tag = 'smem constant byte address 0x4 - core index']
  #allocation1 [shape = 'u32[144,128]{1,0:T(1,128)}', space=vmem, size = 0x12000, scoped, tag = 'internal scratch']
  #allocation2 [shape = 'f32[1,22,32]{2,1,0:T(8,128)}', space=vmem, size = 0x3000, scoped, tag = 'scratch operand']
  %s0 = inlined_call_operand.vmem [shape: f32[2,4,16,16], index: 0, kind: input, shape index: {}]
  %s1 = inlined_call_operand.vmem [shape: bf16[7,32,16], index: 1, kind: input, shape index: {}]
  %s2 = inlined_call_operand.hbm [shape: f32[2,16,16], index: 2, kind: output, shape index: {}]
  %s3 = sld [smem:[#allocation0]]
  $region41: #{tpu_custom_call.1} parent=0
    _
  %s5 = ssub.s32 1, %s3
  %s6 = scalar_select 0, %s5, %s3
  $region1: #{tpu_custom_call.1} parent=0
    #allocation3 [shape = 'u8[16384]{0}', space=vmem, size = 0x4000, scoped, tag = 'output window, operand 0']
    #allocation4 [shape = 's32[2]{0}', space=sflag, size = 0x8, scoped, tag = 'scoped memory for tpu_custom_call.1']
    %7 = vsyncpa [#allocation4], 0
    %s8 = scalar_lea.sflag [#allocation4], 1
    %9 = vsyncpa %s8, 0
    loop: start=0, step=1, limit=4
    $region2: #{tpu_custom_call.1} parent=1 // loop_pre_header
      _
    $region3: #{tpu_custom_call.1} parent=1 // loop_header
      %s11 = sphi 0, %s15
      %p12 = scmp.ge.s32.totalorder %s11, 4
      %s21 = sphi 0, %s23
      %s24 = sphi 0, %s21
      %s25 = sphi 0, %s24
      %s41 = sphi 0, %s25
      %s45 = sphi 0, %s45
      %s47 = sphi 0, %s45
      %s48 = sphi 0, %s47
      %s62 = sphi 0, %s48
      %s68 = sphi 0, %s70
      %s71 = sphi 0, %s68
      %s72 = sphi 0, %s71
      %s88 = sphi 0, %s72
    $region4: #{tpu_custom_call.1} parent=1 // loop_header_branch
      %14 = sbr.rel (%p12) target = $region8
    $region5: #{tpu_custom_call.1} parent=1 // loop_body
      %s16 = ssub.s32 %s11, 1
      %s17 = ssub.s32 %s11, 2
      %s18 = sadd.s32 %s11, 1
      %s19 = ssub.s32 %s11, %s18
      %p20 = scmp.eq.s32.totalorder %s19, 0
      %s22 = sadd.s32 %s21, 1
      %s23 = scalar_select %p20, %s21, %s22
      %p26 = pneg %p20
      %p27 = scmp.eq.s32.totalorder %s11, 1
      %p28 = por %p26, %p27
      %p29 = scmp.ne.s32.totalorder %s21, %s24
      %p30 = scmp.eq.s32.totalorder %s11, 0
      %p31 = por %p29, %p30
      %p32 = scmp.ne.s32.totalorder %s21, %s24
      %p33 = scmp.eq.s32.totalorder %s16, 1
      %p34 = por %p32, %p33
      %p35 = scmp.ne.s32.totalorder %s24, %s25
      %p36 = scmp.eq.s32.totalorder %s16, 0
      %p37 = por %p35, %p36
      %p38 = scmp.ne.s32.totalorder %s24, %s25
      %p39 = scmp.eq.s32.totalorder %s17, 1
      %p40 = por %p38, %p39
      %p42 = scmp.ne.s32.totalorder %s25, %s41
      %p43 = scmp.eq.s32.totalorder %s17, 0
      %p44 = por %p42, %p43
      %s46 = sadd.s32 %s45, 1
      %p49 = scmp.eq.s32.totalorder %s11, 1
      %p50 = scmp.ne.s32.totalorder %s45, %s47
      %p51 = scmp.eq.s32.totalorder %s11, 0
      %p52 = por %p50, %p51
      %p53 = scmp.ne.s32.totalorder %s45, %s47
      %p54 = scmp.eq.s32.totalorder %s16, 1
      %p55 = por %p53, %p54
      %p56 = scmp.ne.s32.totalorder %s47, %s48
      %p57 = scmp.eq.s32.totalorder %s16, 0
      %p58 = por %p56, %p57
      %p59 = scmp.ne.s32.totalorder %s47, %s48
      %p60 = scmp.eq.s32.totalorder %s17, 1
      %p61 = por %p59, %p60
      %p63 = scmp.ne.s32.totalorder %s48, %s62
      %p64 = scmp.eq.s32.totalorder %s17, 0
      %p65 = por %p63, %p64
      %s66 = ssub.s32 %s11, %s18
      %p67 = scmp.eq.s32.totalorder %s66, 0
      %s69 = sadd.s32 %s68, 1
      %s70 = scalar_select %p67, %s68, %s69
      %p73 = pneg %p67
      %p74 = scmp.eq.s32.totalorder %s11, 1
      %p75 = por %p73, %p74
      %p76 = scmp.ne.s32.totalorder %s68, %s71
      %p77 = scmp.eq.s32.totalorder %s11, 0
      %p78 = por %p76, %p77
      %p79 = scmp.ne.s32.totalorder %s68, %s71
      %p80 = scmp.eq.s32.totalorder %s16, 1
      %p81 = por %p79, %p80
      %p82 = scmp.ne.s32.totalorder %s71, %s72
      %p83 = scmp.eq.s32.totalorder %s16, 0
      %p84 = por %p82, %p83
      %p85 = scmp.ne.s32.totalorder %s71, %s72
      %p86 = scmp.eq.s32.totalorder %s17, 1
      %p87 = por %p85, %p86
      %p89 = scmp.ne.s32.totalorder %s72, %s88
      %p90 = scmp.eq.s32.totalorder %s17, 0
      %p91 = por %p89, %p90
      %p92 = scmp.le.s32.totalorder 1, %s11
      %p93 = scmp.lt.s32.totalorder %s11, 3
      %p94 = pnand %p92, %p93
      %p95 = pneg %p94
      // Predicated region
      $region9: #{tpu_custom_call.1} parent=5 // pred_check
        _
      $region10: #{tpu_custom_call.1} parent=5 // pred_check_branch
        %97 = sbr.rel (%p94) target = $region12
      $region11: #{tpu_custom_call.1} parent=5 // pred_region
        %s98 = ssub.s32 %s11, 1
        // Predicated region
        $region13: #{tpu_custom_call.1} parent=11 // pred_check
          %p99 = pneg %p58
        $region14: #{tpu_custom_call.1} parent=11 // pred_check_branch
          %101 = sbr.rel (%p99) target = $region16
        $region15: #{tpu_custom_call.1} parent=11 // pred_region
          _
        $region16: #{tpu_custom_call.1} parent=11 // pred_fallthru
          _
      $region12: #{tpu_custom_call.1} parent=5 // pred_fallthru
        _
      %p102 = scmp.lt.s32.totalorder %s11, 2
      // Predicated region
      $region17: #{tpu_custom_call.1} parent=5 // pred_check
        %p103 = pneg %p102
      $region18: #{tpu_custom_call.1} parent=5 // pred_check_branch
        %105 = sbr.rel (%p103) target = $region20
      $region19: #{tpu_custom_call.1} parent=5 // pred_region
        // Predicated region
        $region21: #{tpu_custom_call.1} parent=19 // pred_check
          %p106 = pneg %p31
        $region22: #{tpu_custom_call.1} parent=19 // pred_check_branch
          %108 = sbr.rel (%p106) target = $region24
        $region23: #{tpu_custom_call.1} parent=19 // pred_region
          %p109 = scmp.lt.s32.totalorder %s11, 1
          %s110 = scalar_select %p109, %s11, 1
          %s111 = smul.addr %s110, 8
          %s112 = smul.addr %s111, 8
          %s113 = scalar_lea.vmem %s0, %s112
        $region24: #{tpu_custom_call.1} parent=19 // pred_fallthru
          _
      $region20: #{tpu_custom_call.1} parent=5 // pred_fallthru
        _
      %p114 = scmp.le.s32.totalorder 1, %s11
      %p115 = scmp.lt.s32.totalorder %s11, 3
      %p116 = pnand %p114, %p115
      %p117 = pneg %p116
      // Predicated region
      $region25: #{tpu_custom_call.1} parent=5 // pred_check
        _
      $region26: #{tpu_custom_call.1} parent=5 // pred_check_branch
        %119 = sbr.rel (%p116) target = $region28
      $region27: #{tpu_custom_call.1} parent=5 // pred_region
        %s120 = ssub.s32 %s11, 1
        %p121 = scmp.lt.s32.totalorder %s16, 1
        %s122 = scalar_select %p121, %s16, 1
        %s123 = smul.addr %s122, 8
        %s124 = smul.addr %s123, 8
        %s125 = scalar_lea.vmem %s0, %s124
        %p126 = pneg %p37
        %p127 = pneg %p34
        %p128 = pneg %p58
        %p129 = pneg %p55
        %p130 = pneg %p84
        %p131 = pneg %p81
        %s132 = sand.u32 %s71, 1
        %s133 = scalar_lea.sflag [#allocation4], %s132
        %s134 = sand.u32 %s71, 1
        %s135 = smul.addr %s134, 16
        %s136 = scalar_lea.vmem [#allocation3], %s135
        %p137 = scmp.lt.s32.totalorder %s16, 1
        %s138 = scalar_select %p137, %s16, 1
        %s139 = smul.addr %s138, 8
        %s140 = smul.addr %s139, 8
        %s141 = scalar_lea.vmem %s0, %s140
        %v143 = vld [vmem:[%s141] sm:$0xff]
        %v144 = vld [vmem:[%s141 + $0x8] sm:$0xff]
        %v145 = vld [vmem:[%s141 + $0x10] sm:$0xff]
        %v146 = vld [vmem:[%s141 + $0x18] sm:$0xff]
        %v147 = vld [vmem:[%s141 + $0x20] sm:$0xff]
        %v148 = vld [vmem:[%s141 + $0x28] sm:$0xff]
        %v149 = vld [vmem:[%s141 + $0x30] sm:$0xff]
        %v150 = vld [vmem:[%s141 + $0x38] sm:$0xff]
        %v151 = vadd.f32 %v143, %v145
        %v152 = vadd.f32 %v144, %v146
        %v153 = vmax.f32 %v143, %v145
        %v154 = vmax.f32 %v144, %v146
        %v155 = vadd.f32 %v151, %v147
        %v156 = vadd.f32 %v152, %v148
        %v157 = vmax.f32 %v153, %v147
        %v158 = vmax.f32 %v154, %v148
        %v159 = vadd.f32 %v155, %v149
        %v160 = vadd.f32 %v156, %v150
        %v161 = vmax.f32 %v157, %v149
        %v162 = vmax.f32 %v158, %v150
        %v163 = vmul.f32 %v159, 0.25
        %v164 = vmul.f32 %v160, 0.25
        %vm165 = vcmask 256000
        %166 = vst.msk [vmem:[#allocation2] sm:$0x7] %vm165, 0.0
        %167 = vst.msk [vmem:[#allocation2 + $0x13] sm:$0x7] %vm165, 0.0
        %vm168 = vcmask 130048
        %169 = vst.msk [vmem:[#allocation2 + $0x3] sm:$0xff] %vm168, %v163
        %170 = vst.msk [vmem:[#allocation2 + $0xb] sm:$0xff] %vm168, %v164
        %173 = vrot.lane.b32.xlu0 %v161, 16
        %v174 = vpop.permute.xlu0 %173
        %175 = vrot.lane.b32.xlu0 %v162, 16
        %v176 = vpop.permute.xlu0 %175
        %vm179 = vcmask 261248
        %180 = vst.msk [vmem:[#allocation2 + $0x3] sm:$0xff] %vm179, %v174
        %181 = vst.msk [vmem:[#allocation2 + $0xb] sm:$0xff] %vm179, %v176
        %v182 = vld [vmem:[#allocation2] sm:$0xff]
        %v183 = vld [vmem:[#allocation2 + $0x8] sm:$0xff]
        %v184 = vpack.c.bf16 %v183, %v182
        %v185 = vld [vmem:[%s1] sm:$0xf]
        %v186 = vld [vmem:[%s1 + $0x4] sm:$0xf]
        %v187 = vld [vmem:[%s1 + $0x8] sm:$0xf]
        %v188 = vld [vmem:[%s1 + $0xc] sm:$0xf]
        %v189 = vld [vmem:[#allocation2 + $0x1] sm:$0xff]
        %v190 = vld [vmem:[#allocation2 + $0x9] sm:$0xff]
        %v191 = vpack.c.bf16 %v190, %v189
        %s192 = scalar_lea.vmem %s1, 16
        %v193 = vld [vmem:[%s192] sm:$0xf]
        %v194 = vld [vmem:[%s192 + $0x4] sm:$0xf]
        %v195 = vld [vmem:[%s192 + $0x8] sm:$0xf]
        %v196 = vld [vmem:[%s192 + $0xc] sm:$0xf]
        %v201 = vunpack.c.l.b16 %v193
        %v202 = vunpack.c.l.b16 %v194
        %v203 = vunpack.c.l.b16 %v195
        %v204 = vunpack.c.l.b16 %v196
        %v205 = vpack.c.b16 %v202, %v201
        %v206 = vpack.c.b16 %v204, %v203
        %vm209 = vcmask 261120
        %v211 = vsel %vm209, %v191, 0
        %213 = vmatprep.subr.bf16.mxu0 0
        %214 = vmatpush1.bf16.msra.mxu0 0
        %215 = vmatprep.subr.bf16.mxu0 0
        %216 = vmatpush1.bf16.msra.mxu0 0
        %217 = vmatprep.subr.bf16.mxu0 0
        %218 = vmatpush1.bf16.msra.mxu0 0
        %219 = vmatprep.subr.bf16.mxu0 0
        %220 = vmatpush1.bf16.msra.mxu0 0
        %221 = vmatprep.subr.bf16.mxu0 0
        %222 = vmatpush1.bf16.msra.mxu0 0
        %223 = vmatprep.subr.bf16.mxu0 0
        %224 = vmatpush1.bf16.msra.mxu0 0
        %225 = vmatprep.subr.bf16.mxu0 0
        %226 = vmatpush1.bf16.msra.mxu0 %v206
        %227 = vmatprep.subr.bf16.mxu0 0
        %228 = vmatpush1.bf16.msra.mxu0 %v205
        %229 = vmatprep.subr.bf16.mxu0 0
        %230 = vmatpush2.bf16.msra.mxu0 0
        %231 = vmatprep.subr.bf16.mxu0 0
        %232 = vmatpush2.bf16.msra.mxu0 0
        %233 = vmatprep.subr.bf16.mxu0 0
        %234 = vmatpush2.bf16.msra.mxu0 0
        %235 = vmatprep.subr.bf16.mxu0 0
        %236 = vmatpush2.bf16.msra.mxu0 0
        %237 = vmatprep.subr.bf16.mxu0 0
        %238 = vmatpush2.bf16.msra.mxu0 0
        %239 = vmatprep.subr.bf16.mxu0 0
        %240 = vmatpush2.bf16.msra.mxu0 0
        %241 = vmatprep.subr.bf16.mxu0 0
        %242 = vmatpush2.bf16.msra.mxu0 0
        %243 = vmatprep.subr.bf16.mxu0 0
        %244 = vmatpush2.bf16.msra.mxu0 0
        %245 = vmatprep.mubr.bf16.mxu0 0
        %246 = vmatmul.mubr.bf16.gmra.mxu0 %v211
        %v247 = vpop.f32.mrf.mxu0
        %v248 = vadd.f32 0.0, %v247
        %v249 = vpop.f32.mrf.mxu0
        %v250 = vpop.f32.mrf.mxu0
        %v251 = vadd.f32 0.0, %v250
        %v252 = vpop.f32.mrf.mxu0
        %253 = vdwg.mxu0
        %v258 = vunpack.c.l.b16 %v185
        %v259 = vunpack.c.l.b16 %v186
        %v260 = vunpack.c.l.b16 %v187
        %v261 = vunpack.c.l.b16 %v188
        %v262 = vpack.c.b16 %v259, %v258
        %v263 = vpack.c.b16 %v261, %v260
        %v267 = vsel %vm209, %v184, 0
        %269 = vmatprep.subr.bf16.mxu0 0
        %270 = vmatpush1.bf16.msra.mxu0 0
        %271 = vmatprep.subr.bf16.mxu0 0
        %272 = vmatpush1.bf16.msra.mxu0 0
        %273 = vmatprep.subr.bf16.mxu0 0
        %274 = vmatpush1.bf16.msra.mxu0 0
        %275 = vmatprep.subr.bf16.mxu0 0
        %276 = vmatpush1.bf16.msra.mxu0 0
        %277 = vmatprep.subr.bf16.mxu0 0
        %278 = vmatpush1.bf16.msra.mxu0 0
        %279 = vmatprep.subr.bf16.mxu0 0
        %280 = vmatpush1.bf16.msra.mxu0 0
        %281 = vmatprep.subr.bf16.mxu0 0
        %282 = vmatpush1.bf16.msra.mxu0 %v263
        %283 = vmatprep.subr.bf16.mxu0 0
        %284 = vmatpush1.bf16.msra.mxu0 %v262
        %285 = vmatprep.subr.bf16.mxu0 0
        %286 = vmatpush2.bf16.msra.mxu0 0
        %287 = vmatprep.subr.bf16.mxu0 0
        %288 = vmatpush2.bf16.msra.mxu0 0
        %289 = vmatprep.subr.bf16.mxu0 0
        %290 = vmatpush2.bf16.msra.mxu0 0
        %291 = vmatprep.subr.bf16.mxu0 0
        %292 = vmatpush2.bf16.msra.mxu0 0
        %293 = vmatprep.subr.bf16.mxu0 0
        %294 = vmatpush2.bf16.msra.mxu0 0
        %295 = vmatprep.subr.bf16.mxu0 0
        %296 = vmatpush2.bf16.msra.mxu0 0
        %297 = vmatprep.subr.bf16.mxu0 0
        %298 = vmatpush2.bf16.msra.mxu0 0
        %299 = vmatprep.subr.bf16.mxu0 0
        %300 = vmatpush2.bf16.msra.mxu0 0
        %301 = vmatprep.mubr.bf16.mxu0 0
        %302 = vmatmul.mubr.bf16.gmra.mxu0 %v267
        %v303 = vpop.f32.mrf.mxu0
        %v304 = vadd.f32 %v248, %v303
        %v305 = vpop.f32.mrf.mxu0
        %v306 = vpop.f32.mrf.mxu0
        %v307 = vadd.f32 %v251, %v306
        %v308 = vpop.f32.mrf.mxu0
        %309 = vdwg.mxu0
        %v310 = vld [vmem:[#allocation2 + $0x2] sm:$0xff]
        %v311 = vld [vmem:[#allocation2 + $0xa] sm:$0xff]
        %v312 = vpack.c.bf16 %v311, %v310
        %s313 = scalar_lea.vmem %s1, 32
        %v314 = vld [vmem:[%s313] sm:$0xf]
        %v315 = vld [vmem:[%s313 + $0x4] sm:$0xf]
        %v316 = vld [vmem:[%s313 + $0x8] sm:$0xf]
        %v317 = vld [vmem:[%s313 + $0xc] sm:$0xf]
        %v322 = vunpack.c.l.b16 %v314
        %v323 = vunpack.c.l.b16 %v315
        %v324 = vunpack.c.l.b16 %v316
        %v325 = vunpack.c.l.b16 %v317
        %v326 = vpack.c.b16 %v323, %v322
        %v327 = vpack.c.b16 %v325, %v324
        %v331 = vsel %vm209, %v312, 0
        %333 = vmatprep.subr.bf16.mxu0 0
        %334 = vmatpush1.bf16.msra.mxu0 0
        %335 = vmatprep.subr.bf16.mxu0 0
        %336 = vmatpush1.bf16.msra.mxu0 0
        %337 = vmatprep.subr.bf16.mxu0 0
        %338 = vmatpush1.bf16.msra.mxu0 0
        %339 = vmatprep.subr.bf16.mxu0 0
        %340 = vmatpush1.bf16.msra.mxu0 0
        %341 = vmatprep.subr.bf16.mxu0 0
        %342 = vmatpush1.bf16.msra.mxu0 0
        %343 = vmatprep.subr.bf16.mxu0 0
        %344 = vmatpush1.bf16.msra.mxu0 0
        %345 = vmatprep.subr.bf16.mxu0 0
        %346 = vmatpush1.bf16.msra.mxu0 %v327
        %347 = vmatprep.subr.bf16.mxu0 0
        %348 = vmatpush1.bf16.msra.mxu0 %v326
        %349 = vmatprep.subr.bf16.mxu0 0
        %350 = vmatpush2.bf16.msra.mxu0 0
        %351 = vmatprep.subr.bf16.mxu0 0
        %352 = vmatpush2.bf16.msra.mxu0 0
        %353 = vmatprep.subr.bf16.mxu0 0
        %354 = vmatpush2.bf16.msra.mxu0 0
        %355 = vmatprep.subr.bf16.mxu0 0
        %356 = vmatpush2.bf16.msra.mxu0 0
        %357 = vmatprep.subr.bf16.mxu0 0
        %358 = vmatpush2.bf16.msra.mxu0 0
        %359 = vmatprep.subr.bf16.mxu0 0
        %360 = vmatpush2.bf16.msra.mxu0 0
        %361 = vmatprep.subr.bf16.mxu0 0
        %362 = vmatpush2.bf16.msra.mxu0 0
        %363 = vmatprep.subr.bf16.mxu0 0
        %364 = vmatpush2.bf16.msra.mxu0 0
        %365 = vmatprep.mubr.bf16.mxu0 0
        %366 = vmatmul.mubr.bf16.gmra.mxu0 %v331
        %v367 = vpop.f32.mrf.mxu0
        %v368 = vadd.f32 0.0, %v367
        %v369 = vpop.f32.mrf.mxu0
        %v370 = vpop.f32.mrf.mxu0
        %v371 = vadd.f32 0.0, %v370
        %v372 = vpop.f32.mrf.mxu0
        %373 = vdwg.mxu0
        %v374 = vadd.f32 %v304, %v368
        %v375 = vadd.f32 %v307, %v371
        %v376 = vld [vmem:[#allocation2 + $0x3] sm:$0xff]
        %v377 = vld [vmem:[#allocation2 + $0xb] sm:$0xff]
        %v378 = vpack.c.bf16 %v377, %v376
        %s379 = scalar_lea.vmem %s1, 48
        %v380 = vld [vmem:[%s379] sm:$0xf]
        %v381 = vld [vmem:[%s379 + $0x4] sm:$0xf]
        %v382 = vld [vmem:[%s379 + $0x8] sm:$0xf]
        %v383 = vld [vmem:[%s379 + $0xc] sm:$0xf]
        %v388 = vunpack.c.l.b16 %v380
        %v389 = vunpack.c.l.b16 %v381
        %v390 = vunpack.c.l.b16 %v382
        %v391 = vunpack.c.l.b16 %v383
        %v392 = vpack.c.b16 %v389, %v388
        %v393 = vpack.c.b16 %v391, %v390
        %v397 = vsel %vm209, %v378, 0
        %399 = vmatprep.subr.bf16.mxu0 0
        %400 = vmatpush1.bf16.msra.mxu0 0
        %401 = vmatprep.subr.bf16.mxu0 0
        %402 = vmatpush1.bf16.msra.mxu0 0
        %403 = vmatprep.subr.bf16.mxu0 0
        %404 = vmatpush1.bf16.msra.mxu0 0
        %405 = vmatprep.subr.bf16.mxu0 0
        %406 = vmatpush1.bf16.msra.mxu0 0
        %407 = vmatprep.subr.bf16.mxu0 0
        %408 = vmatpush1.bf16.msra.mxu0 0
        %409 = vmatprep.subr.bf16.mxu0 0
        %410 = vmatpush1.bf16.msra.mxu0 0
        %411 = vmatprep.subr.bf16.mxu0 0
        %412 = vmatpush1.bf16.msra.mxu0 %v393
        %413 = vmatprep.subr.bf16.mxu0 0
        %414 = vmatpush1.bf16.msra.mxu0 %v392
        %415 = vmatprep.subr.bf16.mxu0 0
        %416 = vmatpush2.bf16.msra.mxu0 0
        %417 = vmatprep.subr.bf16.mxu0 0
        %418 = vmatpush2.bf16.msra.mxu0 0
        %419 = vmatprep.subr.bf16.mxu0 0
        %420 = vmatpush2.bf16.msra.mxu0 0
        %421 = vmatprep.subr.bf16.mxu0 0
        %422 = vmatpush2.bf16.msra.mxu0 0
        %423 = vmatprep.subr.bf16.mxu0 0
        %424 = vmatpush2.bf16.msra.mxu0 0
        %425 = vmatprep.subr.bf16.mxu0 0
        %426 = vmatpush2.bf16.msra.mxu0 0
        %427 = vmatprep.subr.bf16.mxu0 0
        %428 = vmatpush2.bf16.msra.mxu0 0
        %429 = vmatprep.subr.bf16.mxu0 0
        %430 = vmatpush2.bf16.msra.mxu0 0
        %431 = vmatprep.mubr.bf16.mxu0 0
        %432 = vmatmul.mubr.bf16.gmra.mxu0 %v397
        %v433 = vpop.f32.mrf.mxu0
        %v434 = vadd.f32 0.0, %v433
        %v435 = vpop.f32.mrf.mxu0
        %v436 = vpop.f32.mrf.mxu0
        %v437 = vadd.f32 0.0, %v436
        %v438 = vpop.f32.mrf.mxu0
        %439 = vdwg.mxu0
        %v440 = vadd.f32 %v374, %v434
        %v441 = vadd.f32 %v375, %v437
        %v442 = vld [vmem:[#allocation2 + $0x4] sm:$0xff]
        %v443 = vld [vmem:[#allocation2 + $0xc] sm:$0xff]
        %v444 = vpack.c.bf16 %v443, %v442
        %s445 = scalar_lea.vmem %s1, 64
        %v446 = vld [vmem:[%s445] sm:$0xf]
        %v447 = vld [vmem:[%s445 + $0x4] sm:$0xf]
        %v448 = vld [vmem:[%s445 + $0x8] sm:$0xf]
        %v449 = vld [vmem:[%s445 + $0xc] sm:$0xf]
        %v454 = vunpack.c.l.b16 %v446
        %v455 = vunpack.c.l.b16 %v447
        %v456 = vunpack.c.l.b16 %v448
        %v457 = vunpack.c.l.b16 %v449
        %v458 = vpack.c.b16 %v455, %v454
        %v459 = vpack.c.b16 %v457, %v456
        %v463 = vsel %vm209, %v444, 0
        %465 = vmatprep.subr.bf16.mxu0 0
        %466 = vmatpush1.bf16.msra.mxu0 0
        %467 = vmatprep.subr.bf16.mxu0 0
        %468 = vmatpush1.bf16.msra.mxu0 0
        %469 = vmatprep.subr.bf16.mxu0 0
        %470 = vmatpush1.bf16.msra.mxu0 0
        %471 = vmatprep.subr.bf16.mxu0 0
        %472 = vmatpush1.bf16.msra.mxu0 0
        %473 = vmatprep.subr.bf16.mxu0 0
        %474 = vmatpush1.bf16.msra.mxu0 0
        %475 = vmatprep.subr.bf16.mxu0 0
        %476 = vmatpush1.bf16.msra.mxu0 0
        %477 = vmatprep.subr.bf16.mxu0 0
        %478 = vmatpush1.bf16.msra.mxu0 %v459
        %479 = vmatprep.subr.bf16.mxu0 0
        %480 = vmatpush1.bf16.msra.mxu0 %v458
        %481 = vmatprep.subr.bf16.mxu0 0
        %482 = vmatpush2.bf16.msra.mxu0 0
        %483 = vmatprep.subr.bf16.mxu0 0
        %484 = vmatpush2.bf16.msra.mxu0 0
        %485 = vmatprep.subr.bf16.mxu0 0
        %486 = vmatpush2.bf16.msra.mxu0 0
        %487 = vmatprep.subr.bf16.mxu0 0
        %488 = vmatpush2.bf16.msra.mxu0 0
        %489 = vmatprep.subr.bf16.mxu0 0
        %490 = vmatpush2.bf16.msra.mxu0 0
        %491 = vmatprep.subr.bf16.mxu0 0
        %492 = vmatpush2.bf16.msra.mxu0 0
        %493 = vmatprep.subr.bf16.mxu0 0
        %494 = vmatpush2.bf16.msra.mxu0 0
        %495 = vmatprep.subr.bf16.mxu0 0
        %496 = vmatpush2.bf16.msra.mxu0 0
        %497 = vmatprep.mubr.bf16.mxu0 0
        %498 = vmatmul.mubr.bf16.gmra.mxu0 %v463
        %v499 = vpop.f32.mrf.mxu0
        %v500 = vadd.f32 0.0, %v499
        %v501 = vpop.f32.mrf.mxu0
        %v502 = vpop.f32.mrf.mxu0
        %v503 = vadd.f32 0.0, %v502
        %v504 = vpop.f32.mrf.mxu0
        %505 = vdwg.mxu0
        %v506 = vadd.f32 %v440, %v500
        %v507 = vadd.f32 %v441, %v503
        %v508 = vld [vmem:[#allocation2 + $0x5] sm:$0xff]
        %v509 = vld [vmem:[#allocation2 + $0xd] sm:$0xff]
        %v510 = vpack.c.bf16 %v509, %v508
        %s511 = scalar_lea.vmem %s1, 80
        %v512 = vld [vmem:[%s511] sm:$0xf]
        %v513 = vld [vmem:[%s511 + $0x4] sm:$0xf]
        %v514 = vld [vmem:[%s511 + $0x8] sm:$0xf]
        %v515 = vld [vmem:[%s511 + $0xc] sm:$0xf]
        %v520 = vunpack.c.l.b16 %v512
        %v521 = vunpack.c.l.b16 %v513
        %v522 = vunpack.c.l.b16 %v514
        %v523 = vunpack.c.l.b16 %v515
        %v524 = vpack.c.b16 %v521, %v520
        %v525 = vpack.c.b16 %v523, %v522
        %v529 = vsel %vm209, %v510, 0
        %531 = vmatprep.subr.bf16.mxu0 0
        %532 = vmatpush1.bf16.msra.mxu0 0
        %533 = vmatprep.subr.bf16.mxu0 0
        %534 = vmatpush1.bf16.msra.mxu0 0
        %535 = vmatprep.subr.bf16.mxu0 0
        %536 = vmatpush1.bf16.msra.mxu0 0
        %537 = vmatprep.subr.bf16.mxu0 0
        %538 = vmatpush1.bf16.msra.mxu0 0
        %539 = vmatprep.subr.bf16.mxu0 0
        %540 = vmatpush1.bf16.msra.mxu0 0
        %541 = vmatprep.subr.bf16.mxu0 0
        %542 = vmatpush1.bf16.msra.mxu0 0
        %543 = vmatprep.subr.bf16.mxu0 0
        %544 = vmatpush1.bf16.msra.mxu0 %v525
        %545 = vmatprep.subr.bf16.mxu0 0
        %546 = vmatpush1.bf16.msra.mxu0 %v524
        %547 = vmatprep.subr.bf16.mxu0 0
        %548 = vmatpush2.bf16.msra.mxu0 0
        %549 = vmatprep.subr.bf16.mxu0 0
        %550 = vmatpush2.bf16.msra.mxu0 0
        %551 = vmatprep.subr.bf16.mxu0 0
        %552 = vmatpush2.bf16.msra.mxu0 0
        %553 = vmatprep.subr.bf16.mxu0 0
        %554 = vmatpush2.bf16.msra.mxu0 0
        %555 = vmatprep.subr.bf16.mxu0 0
        %556 = vmatpush2.bf16.msra.mxu0 0
        %557 = vmatprep.subr.bf16.mxu0 0
        %558 = vmatpush2.bf16.msra.mxu0 0
        %559 = vmatprep.subr.bf16.mxu0 0
        %560 = vmatpush2.bf16.msra.mxu0 0
        %561 = vmatprep.subr.bf16.mxu0 0
        %562 = vmatpush2.bf16.msra.mxu0 0
        %563 = vmatprep.mubr.bf16.mxu0 0
        %564 = vmatmul.mubr.bf16.gmra.mxu0 %v529
        %v565 = vpop.f32.mrf.mxu0
        %v566 = vadd.f32 0.0, %v565
        %v567 = vpop.f32.mrf.mxu0
        %v568 = vpop.f32.mrf.mxu0
        %v569 = vadd.f32 0.0, %v568
        %v570 = vpop.f32.mrf.mxu0
        %571 = vdwg.mxu0
        %v572 = vadd.f32 %v506, %v566
        %v573 = vadd.f32 %v507, %v569
        %v574 = vld [vmem:[#allocation2 + $0x6] sm:$0xff]
        %v575 = vld [vmem:[#allocation2 + $0xe] sm:$0xff]
        %v576 = vpack.c.bf16 %v575, %v574
        %s577 = scalar_lea.vmem %s1, 96
        %v578 = vld [vmem:[%s577] sm:$0xf]
        %v579 = vld [vmem:[%s577 + $0x4] sm:$0xf]
        %v580 = vld [vmem:[%s577 + $0x8] sm:$0xf]
        %v581 = vld [vmem:[%s577 + $0xc] sm:$0xf]
        %v586 = vunpack.c.l.b16 %v578
        %v587 = vunpack.c.l.b16 %v579
        %v588 = vunpack.c.l.b16 %v580
        %v589 = vunpack.c.l.b16 %v581
        %v590 = vpack.c.b16 %v587, %v586
        %v591 = vpack.c.b16 %v589, %v588
        %v595 = vsel %vm209, %v576, 0
        %597 = vmatprep.subr.bf16.mxu0 0
        %598 = vmatpush1.bf16.msra.mxu0 0
        %599 = vmatprep.subr.bf16.mxu0 0
        %600 = vmatpush1.bf16.msra.mxu0 0
        %601 = vmatprep.subr.bf16.mxu0 0
        %602 = vmatpush1.bf16.msra.mxu0 0
        %603 = vmatprep.subr.bf16.mxu0 0
        %604 = vmatpush1.bf16.msra.mxu0 0
        %605 = vmatprep.subr.bf16.mxu0 0
        %606 = vmatpush1.bf16.msra.mxu0 0
        %607 = vmatprep.subr.bf16.mxu0 0
        %608 = vmatpush1.bf16.msra.mxu0 0
        %609 = vmatprep.subr.bf16.mxu0 0
        %610 = vmatpush1.bf16.msra.mxu0 %v591
        %611 = vmatprep.subr.bf16.mxu0 0
        %612 = vmatpush1.bf16.msra.mxu0 %v590
        %613 = vmatprep.subr.bf16.mxu0 0
        %614 = vmatpush2.bf16.msra.mxu0 0
        %615 = vmatprep.subr.bf16.mxu0 0
        %616 = vmatpush2.bf16.msra.mxu0 0
        %617 = vmatprep.subr.bf16.mxu0 0
        %618 = vmatpush2.bf16.msra.mxu0 0
        %619 = vmatprep.subr.bf16.mxu0 0
        %620 = vmatpush2.bf16.msra.mxu0 0
        %621 = vmatprep.subr.bf16.mxu0 0
        %622 = vmatpush2.bf16.msra.mxu0 0
        %623 = vmatprep.subr.bf16.mxu0 0
        %624 = vmatpush2.bf16.msra.mxu0 0
        %625 = vmatprep.subr.bf16.mxu0 0
        %626 = vmatpush2.bf16.msra.mxu0 0
        %627 = vmatprep.subr.bf16.mxu0 0
        %628 = vmatpush2.bf16.msra.mxu0 0
        %629 = vmatprep.mubr.bf16.mxu0 0
        %630 = vmatmul.mubr.bf16.gmra.mxu0 %v595
        %v631 = vpop.f32.mrf.mxu0
        %v632 = vadd.f32 0.0, %v631
        %v633 = vpop.f32.mrf.mxu0
        %v634 = vpop.f32.mrf.mxu0
        %v635 = vadd.f32 0.0, %v634
        %v636 = vpop.f32.mrf.mxu0
        %637 = vdwg.mxu0
        %v638 = vadd.f32 %v572, %v632
        %v639 = vadd.f32 %v573, %v635
        %v640 = vxor.u32 %v638, 2147483648
        %v641 = vxor.u32 %v639, 2147483648
        %v642 = vmul.f32 %v640, 1.442695
        %v643 = vpow.pop %v642
        %v644 = vmul.f32 %v641, 1.442695
        %v645 = vpow.pop %v644
        %v646 = vadd.f32 %v643, 1.0
        %v647 = vadd.f32 %v645, 1.0
        %v648 = vrcp.pop %v646
        %v649 = vmul.f32 1.0, %v648
        %v650 = vrcp.pop %v647
        %v651 = vmul.f32 1.0, %v650
        %652 = vst.msk [vmem:[%s136] sm:$0xff] %vm168, %v649
        %653 = vst.msk [vmem:[%s136 + $0x8] sm:$0xff] %vm168, %v651
        %s654 = sand.u32 %s71, 1
        %s655 = scalar_lea.sflag [#allocation4], %s654
        %s656 = sand.u32 %s71, 1
        %s657 = smul.addr %s656, 16
        %s658 = scalar_lea.vmem [#allocation3], %s657
        // Predicated region
        $region29: #{tpu_custom_call.1} parent=27 // pred_check
          %p659 = pneg %p81
        $region30: #{tpu_custom_call.1} parent=27 // pred_check_branch
          %661 = sbr.rel (%p659) target = $region32
        $region31: #{tpu_custom_call.1} parent=27 // pred_region
          %s663 = ssub.s32 256, 256
          %664 = vsyncadd %s655, %s663
          %s665 = smul.addr %s16, 2
          %s666 = smul.addr %s665, 128
          %s667 = scalar_lea.hbm %s2, %s666
          %s668 = sshll.u32 %s658, 4
          %s669 = int_to_ptr.vmem [resolvable:$true] %s668
          %674 = dma.vmem_to_hbm [thread:$0]  %s669, 256, %s667, %s655, 128, 128, 8
        $region32: #{tpu_custom_call.1} parent=27 // pred_fallthru
          _
      $region28: #{tpu_custom_call.1} parent=5 // pred_fallthru
        _
      %p675 = scmp.le.s32.totalorder 2, %s11
      // Predicated region
      $region33: #{tpu_custom_call.1} parent=5 // pred_check
        %p676 = pneg %p675
      $region34: #{tpu_custom_call.1} parent=5 // pred_check_branch
        %678 = sbr.rel (%p676) target = $region36
      $region35: #{tpu_custom_call.1} parent=5 // pred_region
        %s679 = ssub.s32 %s11, 2
        // Predicated region
        $region37: #{tpu_custom_call.1} parent=35 // pred_check
          %p680 = pneg %p87
        $region38: #{tpu_custom_call.1} parent=35 // pred_check_branch
          %682 = sbr.rel (%p680) target = $region40
        $region39: #{tpu_custom_call.1} parent=35 // pred_region
          %s683 = sand.u32 %s72, 1
          %s684 = scalar_lea.sflag [#allocation4], %s683
          %s685 = sand.u32 %s72, 1
          %s686 = smul.addr %s685, 16
          %s687 = scalar_lea.vmem [#allocation3], %s686
          %688 = dma.done %s684, 256
        $region40: #{tpu_custom_call.1} parent=35 // pred_fallthru
          _
      $region36: #{tpu_custom_call.1} parent=5 // pred_fallthru
        _
    $region6: #{tpu_custom_call.1} parent=1 // loop_footer
      %s15 = sadd.s32 1, %s11
    $region7: #{tpu_custom_call.1} parent=1 // loop_footer_branch
      %10 = sbr.rel target = $region3
    $region8: #{tpu_custom_call.1} parent=1 // loop_exit
      _
    %689 = vsyncpa [#allocation4], 1
    %s690 = scalar_lea.sflag [#allocation4], 1
    %691 = vsyncpa %s690, 1

</llo_original>
